<compile_context>
chip_gen: v7x
topology: tpu7x:2x2x1
jax: 0.10.0
libtpu: 0.0.40
codegen_flags: <defaults>
</compile_context>

<pallas_src>
import jax
import jax.numpy as jnp
from jax.experimental import pallas as pl
from jax.experimental.pallas import tpu as pltpu


_SPR = 128  # samples packed per reshaped row (one full lane group)


def _round_up(x, m):
    return ((x + m - 1) // m) * m


# ---------------------------------------------------------------------------
# Kernel: one lane-dense row tile per grid step, accumulate (nll_sum, w_sum)
# ---------------------------------------------------------------------------
def _nll_kernel(tgt_ref, pred_ref, e_ref, cls_ref, w_ref, out_ref):
    @pl.when(pl.program_id(0) == 0)
    def _init():
        out_ref[0] = jnp.float32(0.0)   # sum_i  w[t_i] * (-pred[i, t_i])
        out_ref[1] = jnp.float32(0.0)   # sum_i  w[t_i]

    tgt = tgt_ref[...]        # (TR, 128)   f32 class ids (-1 for padding)
    pred = pred_ref[...]      # (TR, 128*C) f32 log-probs (lane-dense)

    # Replicate each sample's target across its C class lanes on the MXU
    # (idle otherwise):  tgt_exp[r, l] = tgt[r, l // C].
    tgt_exp = jnp.dot(tgt, e_ref[...], preferred_element_type=jnp.float32)

    # One-hot pick of the labelled class lane.  |diff| < 0.5 is robust to any
    # matmul rounding (values are small integers); padded targets (-1) never
    # match, so they contribute exactly 0 to both sums.
    sel = jnp.abs(tgt_exp - cls_ref[...]) < 0.5
    w_sel = jnp.where(sel, w_ref[...], 0.0)      # w[t_i] at the picked lane, else 0

    out_ref[0] += -jnp.sum(w_sel * pred)         # weighted NLL partial sum
    out_ref[1] += jnp.sum(w_sel)                 # sum of w[t_i] partial sum


# ---------------------------------------------------------------------------
# Wrapper: lane-dense repacking + pallas_call
# ---------------------------------------------------------------------------
def unmasked_weighted_nll_loss(pred, target, weight=None, *, tile_rows=None):
    n, c = pred.shape
    has_weight = weight is not None
    w = (jnp.ones((c,), jnp.float32) if weight is None
         else jnp.asarray(weight, jnp.float32))

    lanes = _SPR * c                          # reshaped row width (multiple of 128)
    rows = -(-n // _SPR)                      # ceil(n / 128)

    if tile_rows is None:
        # Aim for ~1 MiB pred tiles (double-buffered by the BlockSpec pipeline).
        tile_rows = max(8, ((1 << 20) // (lanes * 4)) // 8 * 8)
    tile_rows = _round_up(max(int(tile_rows), 8), 8)
    tr = min(tile_rows, _round_up(rows, 8))
    rows_pad = _round_up(rows, tr)
    n_pad = rows_pad * _SPR

    # Padding + bit-exact reshapes (row-major, so these are free in XLA).
    pred_p = jnp.pad(pred.astype(jnp.float32), ((0, n_pad - n), (0, 0)))
    pred_p = pred_p.reshape(rows_pad, lanes)
    tgt_p = jnp.pad(target.astype(jnp.int32), (0, n_pad - n), constant_values=-1)
    tgt_p = tgt_p.astype(jnp.float32).reshape(rows_pad, _SPR)

    lane_idx = jnp.arange(lanes, dtype=jnp.int32)
    expand = (lane_idx[None, :] // c ==
              jnp.arange(_SPR, dtype=jnp.int32)[:, None]).astype(jnp.float32)
    cls_row = (lane_idx % c).astype(jnp.float32).reshape(1, lanes)
    w_row = jnp.tile(w, _SPR).reshape(1, lanes)          # w_row[l] = w[l % c]

    grid = (rows_pad // tr,)
    sums = pl.pallas_call(
        _nll_kernel,
        out_shape=jax.ShapeDtypeStruct((2,), jnp.float32),
        grid=grid,
        in_specs=[
            pl.BlockSpec((tr, _SPR), lambda i: (i, 0)),      # targets (tile)
            pl.BlockSpec((tr, lanes), lambda i: (i, 0)),     # log-probs (tile)
            pl.BlockSpec((_SPR, lanes), lambda i: (0, 0)),   # expansion matrix (resident)
            pl.BlockSpec((1, lanes), lambda i: (0, 0)),      # class-of-lane (resident)
            pl.BlockSpec((1, lanes), lambda i: (0, 0)),      # weight-of-lane (resident)
        ],
        out_specs=pl.BlockSpec(memory_space=pltpu.MemorySpace.SMEM),
        compiler_params=pltpu.CompilerParams(
            dimension_semantics=("arbitrary",)),             # reduction grid axis
    )(tgt_p, pred_p, expand, cls_row, w_row)

    loss_sum, w_sum = sums[0], sums[1]
    if has_weight:
        return loss_sum / w_sum
    return loss_sum


# ---------------------------------------------------------------------------
# Pure-JAX reference (mirrors torch nn.NLLLoss(weight, reduction='sum'))
# ---------------------------------------------------------------------------
def _reference_loss(pred, target, weight=None):
    n = pred.shape[0]
    picked = pred[jnp.arange(n), target]
    if weight is None:
        return -jnp.sum(picked)
    w_t = weight[target]
    return -jnp.sum(w_t * picked) / jnp.sum(w_t)


if __name__ == "__main__":
    key = jax.random.PRNGKey(0)

    # --- small shapes consistent with the module: batch=2, seq_len=8, C=4 ---
    batch, seq_len, n_classes = 2, 8, 4
    n = batch * seq_len
    k1, k2, k3, k4, k5 = jax.random.split(key, 5)

    logits = jax.random.normal(k1, (n, n_classes), jnp.float32)
    pred = jax.nn.log_softmax(logits, axis=-1)                     # [B*T, C]
    target = jax.random.randint(k2, (n,), 0, n_classes).astype(jnp.int32)
    weight = jax.random.uniform(k3, (n_classes,), jnp.float32, 0.5, 2.0)

    loss_w = unmasked_weighted_nll_loss(pred, target, weight)      # weighted path
    loss_u = unmasked_weighted_nll_loss(pred, target, None)        # unweighted path
    loss_w, loss_u = jax.block_until_ready((loss_w, loss_u))

    ref_w = _reference_loss(pred, target, weight)
    ref_u = _reference_loss(pred, target, None)
    assert bool(jnp.allclose(loss_w, ref_w, rtol=1e-4, atol=1e-4)), (loss_w, ref_w)
    assert bool(jnp.allclose(loss_u, ref_u, rtol=1e-4, atol=1e-4)), (loss_u, ref_u)

    # --- non-multiple row count: exercises sample padding / masking ---
    n2 = 2051
    logits2 = jax.random.normal(k4, (n2, n_classes), jnp.float32)
    pred2 = jax.nn.log_softmax(logits2, axis=-1)
    target2 = jax.random.randint(k5, (n2,), 0, n_classes).astype(jnp.int32)

    loss2 = jax.block_until_ready(unmasked_weighted_nll_loss(pred2, target2, weight))
    ref2 = _reference_loss(pred2, target2, weight)
    assert bool(jnp.allclose(loss2, ref2, rtol=1e-4, atol=1e-3)), (loss2, ref2)

    # --- small tiles: exercises multi-step grid accumulation (grid > 1) ---
    loss3 = jax.block_until_ready(
        unmasked_weighted_nll_loss(pred2, target2, weight, tile_rows=8))
    assert bool(jnp.allclose(loss3, ref2, rtol=1e-4, atol=1e-3)), (loss3, ref2)

    print("KERNEL_OK")
</pallas_src>

<mosaic_0001>
module attributes {stable_mosaic.version = 11 : i64} {
  func.func @_nll_kernel(%arg0: i32, %arg1: memref<8x128xf32, #tpu.memory_space<vmem>>, %arg2: memref<8x512xf32, #tpu.memory_space<vmem>>, %arg3: memref<128x512xf32, #tpu.memory_space<vmem>>, %arg4: memref<1x512xf32, #tpu.memory_space<vmem>>, %arg5: memref<1x512xf32, #tpu.memory_space<vmem>>, %arg6: memref<2xf32, #tpu.memory_space<smem>>) attributes {dimension_semantics = [#tpu.dimension_semantics<arbitrary>], iteration_bounds = array<i64: 1>, scalar_prefetch = 0 : i64, scratch_operands = 0 : i64, tpu.core_type = #tpu.core_type<tc>, window_params = [{transform_indices = @transform_0, window_bounds = array<i64: 8, 128>}, {transform_indices = @transform_1, window_bounds = array<i64: 8, 512>}, {pipeline_mode = #tpu.pipeline_mode<synchronous>, transform_indices = @transform_2, window_bounds = array<i64: 128, 512>}, {pipeline_mode = #tpu.pipeline_mode<synchronous>, transform_indices = @transform_3, window_bounds = array<i64: 1, 512>}, {pipeline_mode = #tpu.pipeline_mode<synchronous>, transform_indices = @transform_4, window_bounds = array<i64: 1, 512>}, {transform_indices = @transform_5, window_bounds = array<i64: 2>}]} {
    %c0_i32 = arith.constant 0 : i32
    %0 = arith.cmpi eq, %arg0, %c0_i32 : i32
    %1 = arith.extui %0 : i1 to i32
    %c0_i32_0 = arith.constant 0 : i32
    %2 = arith.cmpi ne, %1, %c0_i32_0 : i32
    scf.if %2 {
      %cst_18 = arith.constant 0.000000e+00 : f32
      %c0_19 = arith.constant 0 : index
      %34 = memref.load %arg6[%c0_19] : memref<2xf32, #tpu.memory_space<smem>>
      memref.store %cst_18, %arg6[%c0_19] : memref<2xf32, #tpu.memory_space<smem>>
      %cst_20 = arith.constant 0.000000e+00 : f32
      %c1_21 = arith.constant 1 : index
      %35 = memref.load %arg6[%c1_21] : memref<2xf32, #tpu.memory_space<smem>>
      memref.store %cst_20, %arg6[%c1_21] : memref<2xf32, #tpu.memory_space<smem>>
    } else {
    }
    %c0 = arith.constant 0 : index
    %c0_1 = arith.constant 0 : index
    %3 = vector.load %arg1[%c0, %c0_1] : memref<8x128xf32, #tpu.memory_space<vmem>>, vector<8x128xf32>
    %c0_2 = arith.constant 0 : index
    %c0_3 = arith.constant 0 : index
    %4 = vector.load %arg2[%c0_2, %c0_3] : memref<8x512xf32, #tpu.memory_space<vmem>>, vector<8x512xf32>
    %c0_4 = arith.constant 0 : index
    %c0_5 = arith.constant 0 : index
    %5 = vector.load %arg3[%c0_4, %c0_5] : memref<128x512xf32, #tpu.memory_space<vmem>>, vector<128x512xf32>
    %cst = arith.constant dense<0.000000e+00> : vector<8x512xf32>
    %6 = tpu.matmul %3, %5, %cst {dimension_numbers = #tpu.dot_dimension_numbers<[1], [0], [0], [1], [0, 0, 1, 1], [], []>} : vector<8x128xf32>, vector<128x512xf32>, vector<8x512xf32> -> vector<8x512xf32>
    %c0_6 = arith.constant 0 : index
    %c0_7 = arith.constant 0 : index
    %7 = vector.load %arg4[%c0_6, %c0_7] : memref<1x512xf32, #tpu.memory_space<vmem>>, vector<1x512xf32>
    %8 = vector.broadcast %7 : vector<1x512xf32> to vector<8x512xf32>
    %9 = arith.subf %6, %8 : vector<8x512xf32>
    %10 = math.absf %9 : vector<8x512xf32>
    %cst_8 = arith.constant 5.000000e-01 : f32
    %11 = vector.broadcast %cst_8 : f32 to vector<8x512xf32>
    %12 = arith.cmpf olt, %10, %11 : vector<8x512xf32>
    %c0_9 = arith.constant 0 : index
    %c0_10 = arith.constant 0 : index
    %13 = vector.load %arg5[%c0_9, %c0_10] : memref<1x512xf32, #tpu.memory_space<vmem>>, vector<1x512xf32>
    %cst_11 = arith.constant 0.000000e+00 : f32
    %14 = vector.shape_cast %13 : vector<1x512xf32> to vector<1x512xf32>
    %15 = vector.broadcast %14 : vector<1x512xf32> to vector<8x512xf32>
    %16 = vector.broadcast %cst_11 : f32 to vector<8x512xf32>
    %17 = arith.select %12, %15, %16 : vector<8x512xi1>, vector<8x512xf32>
    %c0_12 = arith.constant 0 : index
    %18 = memref.load %arg6[%c0_12] : memref<2xf32, #tpu.memory_space<smem>>
    %19 = arith.mulf %17, %4 : vector<8x512xf32>
    %20 = vector.shape_cast %19 : vector<8x512xf32> to vector<1x8x512xf32>
    %cst_13 = arith.constant dense<0.000000e+00> : vector<1xf32>
    %21 = vector.multi_reduction <add>, %20, %cst_13 [1, 2] : vector<1x8x512xf32> to vector<1xf32>
    %22 = vector.shape_cast %21 : vector<1xf32> to vector<1x1x1xf32>
    %23 = vector.extract %22[0, 0, 0] : f32 from vector<1x1x1xf32>
    %cst_14 = arith.constant 0.000000e+00 : f32
    %24 = arith.subf %cst_14, %23 : f32
    %25 = arith.addf %18, %24 : f32
    %c0_15 = arith.constant 0 : index
    %26 = memref.load %arg6[%c0_15] : memref<2xf32, #tpu.memory_space<smem>>
    memref.store %25, %arg6[%c0_15] : memref<2xf32, #tpu.memory_space<smem>>
    %c1 = arith.constant 1 : index
    %27 = memref.load %arg6[%c1] : memref<2xf32, #tpu.memory_space<smem>>
    %28 = vector.shape_cast %17 : vector<8x512xf32> to vector<1x8x512xf32>
    %cst_16 = arith.constant dense<0.000000e+00> : vector<1xf32>
    %29 = vector.multi_reduction <add>, %28, %cst_16 [1, 2] : vector<1x8x512xf32> to vector<1xf32>
    %30 = vector.shape_cast %29 : vector<1xf32> to vector<1x1x1xf32>
    %31 = vector.extract %30[0, 0, 0] : f32 from vector<1x1x1xf32>
    %32 = arith.addf %27, %31 : f32
    %c1_17 = arith.constant 1 : index
    %33 = memref.load %arg6[%c1_17] : memref<2xf32, #tpu.memory_space<smem>>
    memref.store %32, %arg6[%c1_17] : memref<2xf32, #tpu.memory_space<smem>>
    return
  }
  func.func @transform_0(%arg0: i32) -> (i32, i32) {
    %c0_i32 = arith.constant 0 : i32
    %c0_i32_0 = arith.constant 0 : i32
    return %arg0, %c0_i32 : i32, i32
  }
  func.func @transform_1(%arg0: i32) -> (i32, i32) {
    %c0_i32 = arith.constant 0 : i32
    %c0_i32_0 = arith.constant 0 : i32
    return %arg0, %c0_i32 : i32, i32
  }
  func.func @transform_2(%arg0: i32) -> (i32, i32) {
    %c0_i32 = arith.constant 0 : i32
    %c0_i32_0 = arith.constant 0 : i32
    %c0_i32_1 = arith.constant 0 : i32
    return %c0_i32, %c0_i32_0 : i32, i32
  }
  func.func @transform_3(%arg0: i32) -> (i32, i32) {
    %c0_i32 = arith.constant 0 : i32
    %c0_i32_0 = arith.constant 0 : i32
    %c0_i32_1 = arith.constant 0 : i32
    return %c0_i32, %c0_i32_0 : i32, i32
  }
  func.func @transform_4(%arg0: i32) -> (i32, i32) {
    %c0_i32 = arith.constant 0 : i32
    %c0_i32_0 = arith.constant 0 : i32
    %c0_i32_1 = arith.constant 0 : i32
    return %c0_i32, %c0_i32_0 : i32, i32
  }
  func.func @transform_5(%arg0: i32) -> i32 {
    %c0_i32 = arith.constant 0 : i32
    %c0_i32_0 = arith.constant 0 : i32
    return %c0_i32 : i32
  }
}

</mosaic_0001>

<llo_original>
// kernel: tpu_custom_call.1
$region0: #{tpu_custom_call.1}
  #allocation0 [shape = 'u32[]', space=smem, size = 0x4, offset = 0x4, fixed_abs, tag = 'smem constant byte address 0x4 - core index']
  #allocation1 [shape = 'u32[144,128]{1,0:T(1,128)}', space=vmem, size = 0x12000, scoped, tag = 'internal scratch']
  %s0 = inlined_call_operand.hbm [shape: f32[8,128], index: 0, kind: input, shape index: {}]
  %s1 = inlined_call_operand.hbm [shape: f32[8,512], index: 1, kind: input, shape index: {}]
  %s2 = inlined_call_operand.hbm [shape: f32[128,512], index: 2, kind: input, shape index: {}]
  %s3 = inlined_call_operand.vmem [shape: f32[1,512], index: 3, kind: input, shape index: {}]
  %s4 = inlined_call_operand.vmem [shape: f32[1,512], index: 4, kind: input, shape index: {}]
  %s5 = inlined_call_operand.hbm [shape: f32[2], index: 5, kind: output, shape index: {}]
  %s6 = sld [smem:[#allocation0]]
  $region46: #{tpu_custom_call.1} parent=0
    _
  %s8 = ssub.s32 1, %s6
  %s9 = scalar_select 0, %s8, %s6
  $region1: #{tpu_custom_call.1} parent=0
    #allocation2 [shape = 'u8[4096]{0}', space=vmem, size = 0x1000, scoped, tag = 'input window, operand 0, single buffered']
    #allocation3 [shape = 's32[1]{0}', space=sflag, size = 0x4, scoped, tag = 'scoped memory for tpu_custom_call.1']
    #allocation4 [shape = 's32[1]{0}', space=sflag, size = 0x4, scoped, tag = 'scoped memory for tpu_custom_call.1']
    #allocation5 [shape = 'u8[16384]{0}', space=vmem, size = 0x4000, scoped, tag = 'input window, operand 1, single buffered']
    #allocation6 [shape = 's32[1]{0}', space=sflag, size = 0x4, scoped, tag = 'scoped memory for tpu_custom_call.1']
    #allocation7 [shape = 'u8[262144]{0}', space=vmem, size = 0x40000, scoped, tag = 'input window, operand 2, single buffered']
    #allocation8 [shape = 'u8[512]{0}', space=smem, size = 0x200, scoped, tag = 'output window, operand 0, single buffered']
    %10 = vsyncpa [#allocation3], 0
    %11 = vsyncpa [#allocation6], 0
    %12 = vsyncpa [#allocation4], 0
    // Predicated region
    $region2: #{tpu_custom_call.1} parent=1 // pred_check
      _
    $region3: #{tpu_custom_call.1} parent=1 // pred_check_branch
      %14 = sbr.rel (0) target = $region5
    $region4: #{tpu_custom_call.1} parent=1 // pred_region
      %s16 = ssub.s32 128, 128
      %17 = vsyncadd [#allocation3], %s16
      %s19 = sshll.u32 [#allocation2], 4
      %s20 = int_to_ptr.vmem [resolvable:$true] %s19
      %22 = dma.hbm_to_vmem [thread:$0]  %s0, 128, %s20, [#allocation3]
    $region5: #{tpu_custom_call.1} parent=1 // pred_fallthru
      _
    // Predicated region
    $region6: #{tpu_custom_call.1} parent=1 // pred_check
      _
    $region7: #{tpu_custom_call.1} parent=1 // pred_check_branch
      %24 = sbr.rel (0) target = $region9
    $region8: #{tpu_custom_call.1} parent=1 // pred_region
      %s26 = ssub.s32 512, 512
      %27 = vsyncadd [#allocation6], %s26
      %s29 = sshll.u32 [#allocation5], 4
      %s30 = int_to_ptr.vmem [resolvable:$true] %s29
      %32 = dma.hbm_to_vmem [thread:$0]  %s1, 512, %s30, [#allocation6]
    $region9: #{tpu_custom_call.1} parent=1 // pred_fallthru
      _
    // Predicated region
    $region10: #{tpu_custom_call.1} parent=1 // pred_check
      _
    $region11: #{tpu_custom_call.1} parent=1 // pred_check_branch
      %34 = sbr.rel (0) target = $region13
    $region12: #{tpu_custom_call.1} parent=1 // pred_region
      %s36 = ssub.s32 8192, 8192
      %37 = vsyncadd [#allocation6], %s36
      %s38 = sshll.u32 [#allocation7], 4
      %s39 = int_to_ptr.vmem [resolvable:$true] %s38
      %44 = dma.hbm_to_vmem [thread:$0]  %s2, 8192, %s39, [#allocation6], 512, 512, 32
    $region13: #{tpu_custom_call.1} parent=1 // pred_fallthru
      _
    // Predicated region
    $region14: #{tpu_custom_call.1} parent=1 // pred_check
      _
    $region15: #{tpu_custom_call.1} parent=1 // pred_check_branch
      %46 = sbr.rel (0) target = $region17
    $region16: #{tpu_custom_call.1} parent=1 // pred_region
      _
    $region17: #{tpu_custom_call.1} parent=1 // pred_fallthru
      _
    // Predicated region
    $region18: #{tpu_custom_call.1} parent=1 // pred_check
      _
    $region19: #{tpu_custom_call.1} parent=1 // pred_check_branch
      %48 = sbr.rel (0) target = $region21
    $region20: #{tpu_custom_call.1} parent=1 // pred_region
      _
    $region21: #{tpu_custom_call.1} parent=1 // pred_fallthru
      _
    // Predicated region
    $region22: #{tpu_custom_call.1} parent=1 // pred_check
      _
    $region23: #{tpu_custom_call.1} parent=1 // pred_check_branch
      %50 = sbr.rel (0) target = $region25
    $region24: #{tpu_custom_call.1} parent=1 // pred_region
      %51 = dma.done [#allocation3], 128
    $region25: #{tpu_custom_call.1} parent=1 // pred_fallthru
      _
    // Predicated region
    $region26: #{tpu_custom_call.1} parent=1 // pred_check
      _
    $region27: #{tpu_custom_call.1} parent=1 // pred_check_branch
      %53 = sbr.rel (0) target = $region29
    $region28: #{tpu_custom_call.1} parent=1 // pred_region
      %54 = dma.done [#allocation6], 512
    $region29: #{tpu_custom_call.1} parent=1 // pred_fallthru
      _
    // Predicated region
    $region30: #{tpu_custom_call.1} parent=1 // pred_check
      _
    $region31: #{tpu_custom_call.1} parent=1 // pred_check_branch
      %56 = sbr.rel (0) target = $region33
    $region32: #{tpu_custom_call.1} parent=1 // pred_region
      %57 = dma.done [#allocation6], 8192
    $region33: #{tpu_custom_call.1} parent=1 // pred_fallthru
      _
    %p58 = scmp.eq.s32.totalorder 0, 0
    // Predicated region
    $region34: #{tpu_custom_call.1} parent=1 // pred_check
      %p59 = pneg %p58
    $region35: #{tpu_custom_call.1} parent=1 // pred_check_branch
      %61 = sbr.rel (%p59) target = $region37
    $region36: #{tpu_custom_call.1} parent=1 // pred_region
      %s62 = scalar_lea.smem [#allocation8], 0
      %63 = sst [smem:[%s62]] 0.0
      %s64 = scalar_lea.smem [#allocation8], 1
      %65 = sst [smem:[%s64]] 0.0
    $region37: #{tpu_custom_call.1} parent=1 // pred_fallthru
      _
    %v66 = vld [vmem:[#allocation2] sm:$0xff]
    %v67 = vld [vmem:[#allocation5] sm:$0xff]
    %v68 = vld [vmem:[#allocation5 + $0x8] sm:$0xff]
    %v69 = vld [vmem:[#allocation5 + $0x10] sm:$0xff]
    %v70 = vld [vmem:[#allocation5 + $0x18] sm:$0xff]
    %v71 = vld [vmem:[#allocation7] sm:$0xff]
    %v72 = vld [vmem:[#allocation7 + $0x8] sm:$0xff]
    %v73 = vld [vmem:[#allocation7 + $0x10] sm:$0xff]
    %v74 = vld [vmem:[#allocation7 + $0x18] sm:$0xff]
    %v75 = vld [vmem:[#allocation7 + $0x20] sm:$0xff]
    %v76 = vld [vmem:[#allocation7 + $0x28] sm:$0xff]
    %v77 = vld [vmem:[#allocation7 + $0x30] sm:$0xff]
    %v78 = vld [vmem:[#allocation7 + $0x38] sm:$0xff]
    %v79 = vld [vmem:[#allocation7 + $0x40] sm:$0xff]
    %v80 = vld [vmem:[#allocation7 + $0x48] sm:$0xff]
    %v81 = vld [vmem:[#allocation7 + $0x50] sm:$0xff]
    %v82 = vld [vmem:[#allocation7 + $0x58] sm:$0xff]
    %v83 = vld [vmem:[#allocation7 + $0x60] sm:$0xff]
    %v84 = vld [vmem:[#allocation7 + $0x68] sm:$0xff]
    %v85 = vld [vmem:[#allocation7 + $0x70] sm:$0xff]
    %v86 = vld [vmem:[#allocation7 + $0x78] sm:$0xff]
    %v87 = vld [vmem:[#allocation7 + $0x80] sm:$0xff]
    %v88 = vld [vmem:[#allocation7 + $0x88] sm:$0xff]
    %v89 = vld [vmem:[#allocation7 + $0x90] sm:$0xff]
    %v90 = vld [vmem:[#allocation7 + $0x98] sm:$0xff]
    %v91 = vld [vmem:[#allocation7 + $0xa0] sm:$0xff]
    %v92 = vld [vmem:[#allocation7 + $0xa8] sm:$0xff]
    %v93 = vld [vmem:[#allocation7 + $0xb0] sm:$0xff]
    %v94 = vld [vmem:[#allocation7 + $0xb8] sm:$0xff]
    %v95 = vld [vmem:[#allocation7 + $0xc0] sm:$0xff]
    %v96 = vld [vmem:[#allocation7 + $0xc8] sm:$0xff]
    %v97 = vld [vmem:[#allocation7 + $0xd0] sm:$0xff]
    %v98 = vld [vmem:[#allocation7 + $0xd8] sm:$0xff]
    %v99 = vld [vmem:[#allocation7 + $0xe0] sm:$0xff]
    %v100 = vld [vmem:[#allocation7 + $0xe8] sm:$0xff]
    %v101 = vld [vmem:[#allocation7 + $0xf0] sm:$0xff]
    %v102 = vld [vmem:[#allocation7 + $0xf8] sm:$0xff]
    %v103 = vld [vmem:[#allocation7 + $0x100] sm:$0xff]
    %v104 = vld [vmem:[#allocation7 + $0x108] sm:$0xff]
    %v105 = vld [vmem:[#allocation7 + $0x110] sm:$0xff]
    %v106 = vld [vmem:[#allocation7 + $0x118] sm:$0xff]
    %v107 = vld [vmem:[#allocation7 + $0x120] sm:$0xff]
    %v108 = vld [vmem:[#allocation7 + $0x128] sm:$0xff]
    %v109 = vld [vmem:[#allocation7 + $0x130] sm:$0xff]
    %v110 = vld [vmem:[#allocation7 + $0x138] sm:$0xff]
    %v111 = vld [vmem:[#allocation7 + $0x140] sm:$0xff]
    %v112 = vld [vmem:[#allocation7 + $0x148] sm:$0xff]
    %v113 = vld [vmem:[#allocation7 + $0x150] sm:$0xff]
    %v114 = vld [vmem:[#allocation7 + $0x158] sm:$0xff]
    %v115 = vld [vmem:[#allocation7 + $0x160] sm:$0xff]
    %v116 = vld [vmem:[#allocation7 + $0x168] sm:$0xff]
    %v117 = vld [vmem:[#allocation7 + $0x170] sm:$0xff]
    %v118 = vld [vmem:[#allocation7 + $0x178] sm:$0xff]
    %v119 = vld [vmem:[#allocation7 + $0x180] sm:$0xff]
    %v120 = vld [vmem:[#allocation7 + $0x188] sm:$0xff]
    %v121 = vld [vmem:[#allocation7 + $0x190] sm:$0xff]
    %v122 = vld [vmem:[#allocation7 + $0x198] sm:$0xff]
    %v123 = vld [vmem:[#allocation7 + $0x1a0] sm:$0xff]
    %v124 = vld [vmem:[#allocation7 + $0x1a8] sm:$0xff]
    %v125 = vld [vmem:[#allocation7 + $0x1b0] sm:$0xff]
    %v126 = vld [vmem:[#allocation7 + $0x1b8] sm:$0xff]
    %v127 = vld [vmem:[#allocation7 + $0x1c0] sm:$0xff]
    %v128 = vld [vmem:[#allocation7 + $0x1c8] sm:$0xff]
    %v129 = vld [vmem:[#allocation7 + $0x1d0] sm:$0xff]
    %v130 = vld [vmem:[#allocation7 + $0x1d8] sm:$0xff]
    %v131 = vld [vmem:[#allocation7 + $0x1e0] sm:$0xff]
    %v132 = vld [vmem:[#allocation7 + $0x1e8] sm:$0xff]
    %v133 = vld [vmem:[#allocation7 + $0x1f0] sm:$0xff]
    %v134 = vld [vmem:[#allocation7 + $0x1f8] sm:$0xff]
    %135 = vmatprep.subr.mxu0 %v72
    %136 = vmatpush1.msra.mxu0 %v71
    %137 = vmatprep.subr.mxu0 %v76
    %138 = vmatpush1.msra.mxu0 %v75
    %139 = vmatprep.subr.mxu0 %v80
    %140 = vmatpush1.msra.mxu0 %v79
    %141 = vmatprep.subr.mxu0 %v84
    %142 = vmatpush1.msra.mxu0 %v83
    %143 = vmatprep.subr.mxu0 %v88
    %144 = vmatpush1.msra.mxu0 %v87
    %145 = vmatprep.subr.mxu0 %v92
    %146 = vmatpush1.msra.mxu0 %v91
    %147 = vmatprep.subr.mxu0 %v96
    %148 = vmatpush1.msra.mxu0 %v95
    %149 = vmatprep.subr.mxu0 %v100
    %150 = vmatpush1.msra.mxu0 %v99
    %151 = vmatprep.subr.mxu0 %v104
    %152 = vmatpush1.msra.mxu0 %v103
    %153 = vmatprep.subr.mxu0 %v108
    %154 = vmatpush1.msra.mxu0 %v107
    %155 = vmatprep.subr.mxu0 %v112
    %156 = vmatpush1.msra.mxu0 %v111
    %157 = vmatprep.subr.mxu0 %v116
    %158 = vmatpush1.msra.mxu0 %v115
    %159 = vmatprep.subr.mxu0 %v120
    %160 = vmatpush1.msra.mxu0 %v119
    %161 = vmatprep.subr.mxu0 %v124
    %162 = vmatpush1.msra.mxu0 %v123
    %163 = vmatprep.subr.mxu0 %v128
    %164 = vmatpush1.msra.mxu0 %v127
    %165 = vmatprep.subr.mxu0 %v132
    %166 = vmatpush1.msra.mxu0 %v131
    %167 = vmatprep.subr.mxu0 0.0
    %168 = vmatpush1.msra.mxu0 0.0
    %169 = vmatprep.subr.mxu0 0.0
    %170 = vmatpush1.msra.mxu0 0.0
    %171 = vmatprep.subr.mxu0 0.0
    %172 = vmatpush1.msra.mxu0 0.0
    %173 = vmatprep.subr.mxu0 0.0
    %174 = vmatpush1.msra.mxu0 0.0
    %175 = vmatprep.subr.mxu0 0.0
    %176 = vmatpush1.msra.mxu0 0.0
    %177 = vmatprep.subr.mxu0 0.0
    %178 = vmatpush1.msra.mxu0 0.0
    %179 = vmatprep.subr.mxu0 0.0
    %180 = vmatpush1.msra.mxu0 0.0
    %181 = vmatprep.subr.mxu0 0.0
    %182 = vmatpush1.msra.mxu0 0.0
    %183 = vmatprep.subr.mxu0 0.0
    %184 = vmatpush1.msra.mxu0 0.0
    %185 = vmatprep.subr.mxu0 0.0
    %186 = vmatpush1.msra.mxu0 0.0
    %187 = vmatprep.subr.mxu0 0.0
    %188 = vmatpush1.msra.mxu0 0.0
    %189 = vmatprep.subr.mxu0 0.0
    %190 = vmatpush1.msra.mxu0 0.0
    %191 = vmatprep.subr.mxu0 0.0
    %192 = vmatpush1.msra.mxu0 0.0
    %193 = vmatprep.subr.mxu0 0.0
    %194 = vmatpush1.msra.mxu0 0.0
    %195 = vmatprep.subr.mxu0 0.0
    %196 = vmatpush1.msra.mxu0 0.0
    %197 = vmatprep.subr.mxu0 0.0
    %198 = vmatpush1.msra.mxu0 0.0
    %199 = vmatprep.mubr.f32.mxu0 0.0
    %200 = vmatmul.mubr.f32.gmra.mrb[0].mxu0 %v66
    %v201 = vpop.f32.mrb[0].mxu0
    %v202 = vadd.f32 0.0, %v201
    %v203 = vpop.f32.mrb[0].mxu0
    %v204 = vadd.f32 0.0, %v203
    %205 = vdwg.mxu0
    %206 = vmatprep.subr.mxu0 %v74
    %207 = vmatpush1.msra.mxu0 %v73
    %208 = vmatprep.subr.mxu0 %v78
    %209 = vmatpush1.msra.mxu0 %v77
    %210 = vmatprep.subr.mxu0 %v82
    %211 = vmatpush1.msra.mxu0 %v81
    %212 = vmatprep.subr.mxu0 %v86
    %213 = vmatpush1.msra.mxu0 %v85
    %214 = vmatprep.subr.mxu0 %v90
    %215 = vmatpush1.msra.mxu0 %v89
    %216 = vmatprep.subr.mxu0 %v94
    %217 = vmatpush1.msra.mxu0 %v93
    %218 = vmatprep.subr.mxu0 %v98
    %219 = vmatpush1.msra.mxu0 %v97
    %220 = vmatprep.subr.mxu0 %v102
    %221 = vmatpush1.msra.mxu0 %v101
    %222 = vmatprep.subr.mxu0 %v106
    %223 = vmatpush1.msra.mxu0 %v105
    %224 = vmatprep.subr.mxu0 %v110
    %225 = vmatpush1.msra.mxu0 %v109
    %226 = vmatprep.subr.mxu0 %v114
    %227 = vmatpush1.msra.mxu0 %v113
    %228 = vmatprep.subr.mxu0 %v118
    %229 = vmatpush1.msra.mxu0 %v117
    %230 = vmatprep.subr.mxu0 %v122
    %231 = vmatpush1.msra.mxu0 %v121
    %232 = vmatprep.subr.mxu0 %v126
    %233 = vmatpush1.msra.mxu0 %v125
    %234 = vmatprep.subr.mxu0 %v130
    %235 = vmatpush1.msra.mxu0 %v129
    %236 = vmatprep.subr.mxu0 %v134
    %237 = vmatpush1.msra.mxu0 %v133
    %238 = vmatprep.subr.mxu0 0.0
    %239 = vmatpush1.msra.mxu0 0.0
    %240 = vmatprep.subr.mxu0 0.0
    %241 = vmatpush1.msra.mxu0 0.0
    %242 = vmatprep.subr.mxu0 0.0
    %243 = vmatpush1.msra.mxu0 0.0
    %244 = vmatprep.subr.mxu0 0.0
    %245 = vmatpush1.msra.mxu0 0.0
    %246 = vmatprep.subr.mxu0 0.0
    %247 = vmatpush1.msra.mxu0 0.0
    %248 = vmatprep.subr.mxu0 0.0
    %249 = vmatpush1.msra.mxu0 0.0
    %250 = vmatprep.subr.mxu0 0.0
    %251 = vmatpush1.msra.mxu0 0.0
    %252 = vmatprep.subr.mxu0 0.0
    %253 = vmatpush1.msra.mxu0 0.0
    %254 = vmatprep.subr.mxu0 0.0
    %255 = vmatpush1.msra.mxu0 0.0
    %256 = vmatprep.subr.mxu0 0.0
    %257 = vmatpush1.msra.mxu0 0.0
    %258 = vmatprep.subr.mxu0 0.0
    %259 = vmatpush1.msra.mxu0 0.0
    %260 = vmatprep.subr.mxu0 0.0
    %261 = vmatpush1.msra.mxu0 0.0
    %262 = vmatprep.subr.mxu0 0.0
    %263 = vmatpush1.msra.mxu0 0.0
    %264 = vmatprep.subr.mxu0 0.0
    %265 = vmatpush1.msra.mxu0 0.0
    %266 = vmatprep.subr.mxu0 0.0
    %267 = vmatpush1.msra.mxu0 0.0
    %268 = vmatprep.subr.mxu0 0.0
    %269 = vmatpush1.msra.mxu0 0.0
    %270 = vmatprep.mubr.f32.mxu0 0.0
    %271 = vmatmul.mubr.f32.gmra.mrb[0].mxu0 %v66
    %v272 = vpop.f32.mrb[0].mxu0
    %v273 = vadd.f32 0.0, %v272
    %v274 = vpop.f32.mrb[0].mxu0
    %v275 = vadd.f32 0.0, %v274
    %276 = vdwg.mxu0
    %v277 = vld [vmem:[%s3] sm:$0xf]
    %v279 = vlaneseq
    %v280 = vshrl.u32 %v279, 7
    %v281 = vsub.s32 0, %v280
    %v282 = vrot.slane %v277, %v281
    %v283 = vlaneseq
    %v284 = vshrl.u32 %v283, 7
    %v285 = vsub.s32 1, %v284
    %v286 = vrot.slane %v277, %v285
    %v287 = vlaneseq
    %v288 = vshrl.u32 %v287, 7
    %v289 = vsub.s32 2, %v288
    %v290 = vrot.slane %v277, %v289
    %v291 = vlaneseq
    %v292 = vshrl.u32 %v291, 7
    %v293 = vsub.s32 3, %v292
    %v294 = vrot.slane %v277, %v293
    %v299 = vsub.f32 %v202, %v282
    %v300 = vsub.f32 %v204, %v286
    %v301 = vsub.f32 %v273, %v290
    %v302 = vsub.f32 %v275, %v294
    %v303 = vand.u32 2147483647, %v299
    %v304 = vand.u32 2147483647, %v300
    %v305 = vand.u32 2147483647, %v301
    %v306 = vand.u32 2147483647, %v302
    %vm307 = vcmp.lt.f32.partialorder %v303, 0.5
    %vm308 = vcmp.lt.f32.partialorder %v304, 0.5
    %vm309 = vcmp.lt.f32.partialorder %v305, 0.5
    %vm310 = vcmp.lt.f32.partialorder %v306, 0.5
    %v311 = vld [vmem:[%s4] sm:$0xf]
    %v313 = vlaneseq
    %v314 = vshrl.u32 %v313, 7
    %v315 = vsub.s32 0, %v314
    %v316 = vrot.slane %v311, %v315
    %v317 = vlaneseq
    %v318 = vshrl.u32 %v317, 7
    %v319 = vsub.s32 1, %v318
    %v320 = vrot.slane %v311, %v319
    %v321 = vlaneseq
    %v322 = vshrl.u32 %v321, 7
    %v323 = vsub.s32 2, %v322
    %v324 = vrot.slane %v311, %v323
    %v325 = vlaneseq
    %v326 = vshrl.u32 %v325, 7
    %v327 = vsub.s32 3, %v326
    %v328 = vrot.slane %v311, %v327
    %v333 = vsel %vm307, %v316, 0.0
    %v334 = vsel %vm308, %v320, 0.0
    %v335 = vsel %vm309, %v324, 0.0
    %v336 = vsel %vm310, %v328, 0.0
    %s337 = sld [smem:[#allocation8]]
    %v338 = vmul.f32 %v333, %v67
    %v339 = vmul.f32 %v334, %v68
    %v340 = vmul.f32 %v335, %v69
    %v341 = vmul.f32 %v336, %v70
    %v342 = vadd.f32 %v338, %v339
    %v343 = vadd.f32 %v342, %v340
    %v344 = vadd.f32 %v343, %v341
    %345 = vadd.xlane.f32.xlu0 %v344
    %v346 = vpop.xlane.xlu0 %345
    %v347 = vrot.slane %v346, 4
    %v348 = vadd.f32 %v346, %v347
    %v349 = vrot.slane %v348, 2
    %v350 = vadd.f32 %v348, %v349
    %v351 = vrot.slane %v350, 1
    %v352 = vadd.f32 %v350, %v351
    %s353 = vtos %v352
    %s354 = ssub.f32 0.0, %s353
    %s355 = sadd.f32 %s337, %s354
    %s356 = scalar_lea.smem [#allocation8], 0
    %357 = sst [smem:[%s356]] %s355
    %s358 = sld [smem:[#allocation8 + $0x1]]
    %v359 = vadd.f32 %v333, %v334
    %v360 = vadd.f32 %v359, %v335
    %v361 = vadd.f32 %v360, %v336
    %362 = vadd.xlane.f32.xlu0 %v361
    %v363 = vpop.xlane.xlu0 %362
    %v364 = vrot.slane %v363, 4
    %v365 = vadd.f32 %v363, %v364
    %v366 = vrot.slane %v365, 2
    %v367 = vadd.f32 %v365, %v366
    %v368 = vrot.slane %v367, 1
    %v369 = vadd.f32 %v367, %v368
    %s370 = vtos %v369
    %s371 = sadd.f32 %s358, %s370
    %s372 = scalar_lea.smem [#allocation8], 1
    %373 = sst [smem:[%s372]] %s371
    // Predicated region
    $region38: #{tpu_custom_call.1} parent=1 // pred_check
      _
    $region39: #{tpu_custom_call.1} parent=1 // pred_check_branch
      %375 = sbr.rel (0) target = $region41
    $region40: #{tpu_custom_call.1} parent=1 // pred_region
      %s377 = ssub.s32 16, 16
      %378 = vsyncadd [#allocation4], %s377
      %381 = dma.smem_to_hbm [#allocation8], 16, %s5, [#allocation4]
    $region41: #{tpu_custom_call.1} parent=1 // pred_fallthru
      _
    // Predicated region
    $region42: #{tpu_custom_call.1} parent=1 // pred_check
      _
    $region43: #{tpu_custom_call.1} parent=1 // pred_check_branch
      %383 = sbr.rel (0) target = $region45
    $region44: #{tpu_custom_call.1} parent=1 // pred_region
      %384 = dma.done [#allocation4], 16
    $region45: #{tpu_custom_call.1} parent=1 // pred_fallthru
      _
    %385 = sfence
    %386 = vsyncpa [#allocation3], 1
    %387 = vsyncpa [#allocation6], 1
    %388 = vsyncpa [#allocation4], 1

</llo_original>
